<compile_context>
chip_gen: v7x
topology: tpu7x:2x2x1
jax: 0.10.0
libtpu: 0.0.40
codegen_flags: <defaults>
</compile_context>

<pallas_src>
import jax
import jax.numpy as jnp
from jax.experimental import pallas as pl
from jax.experimental.pallas import tpu as pltpu


def _round_up(x, m):
    return ((x + m - 1) // m) * m


# ----------------------------------------------------------------------------
# Kernel 1: the two small hidden layers (Linear+Tanh, Linear+Tanh), run once.
# ----------------------------------------------------------------------------
def hidden_kernel(z_ref, w1_ref, b1_ref, w2_ref, b2_ref, h_ref):
    h1 = jnp.tanh(
        jnp.dot(z_ref[...], w1_ref[...], preferred_element_type=jnp.float32)
        + b1_ref[...]
    )
    h2 = jnp.tanh(
        jnp.dot(h1, w2_ref[...], preferred_element_type=jnp.float32) + b2_ref[...]
    )
    h_ref[...] = h2.astype(h_ref.dtype)


# ----------------------------------------------------------------------------
# Kernel 2: the large output Linear + Sigmoid, tiled over output columns.
# ----------------------------------------------------------------------------
def output_kernel(h_ref, w3_ref, b3_ref, out_ref):
    logits = (
        jnp.dot(h_ref[...], w3_ref[...], preferred_element_type=jnp.float32)
        + b3_ref[...]
    )
    out_ref[...] = jax.nn.sigmoid(logits).astype(out_ref.dtype)


# ----------------------------------------------------------------------------
# Parameter preparation: pad once, store the big W3 in bf16.
# ----------------------------------------------------------------------------
def prepare_decoder_params(params, *, tile_n=512, weight_dtype=jnp.bfloat16):
    """Pad weights to MXU/lane-friendly shapes and quantize W3 to bf16.

    Zero padding is exact: padded hidden units see zero weights + zero bias,
    tanh(0)=0, and padded W3 rows are zero, so results are unchanged.
    """
    w1, b1, w2, b2, w3, b3 = params
    d_in, H = w1.shape
    Hn, N = w3.shape
    assert Hn == H and w2.shape == (H, H)
    assert tile_n % 128 == 0

    h_pad = _round_up(H, 128)
    n_pad128 = _round_up(N, 128)

    tile = min(tile_n, n_pad128)
    # Keep >= 2 grid steps whenever possible so the "parallel" axis can shard
    # across both TensorCores on v7x (single-TC chips are unaffected).
    if n_pad128 // tile < 2 and n_pad128 >= 256:
        tile = max(128, ((n_pad128 // 2) // 128) * 128)
    n_pad = _round_up(N, tile)

    f32 = jnp.float32
    w1p = jnp.pad(w1.astype(f32), ((0, 0), (0, h_pad - H)))
    b1p = jnp.pad(b1.astype(f32), ((0, 0), (0, h_pad - H)))
    w2p = jnp.pad(w2.astype(f32), ((0, h_pad - H), (0, h_pad - H)))
    b2p = jnp.pad(b2.astype(f32), ((0, 0), (0, h_pad - H)))
    # W3 is the only large HBM stream -> store in bf16 (halves bytes moved).
    w3p = jnp.pad(w3.astype(weight_dtype), ((0, h_pad - H), (0, n_pad - N)))
    b3p = jnp.pad(b3.astype(f32), ((0, 0), (0, n_pad - N)))

    return dict(
        w1=w1p, b1=b1p, w2=w2p, b2=b2p, w3=w3p, b3=b3p,
        tile_n=tile, n_out=N, h_pad=h_pad, act_dtype=weight_dtype,
    )


# ----------------------------------------------------------------------------
# Forward pass.
# ----------------------------------------------------------------------------
def decoder_forward(z, prep):
    B = z.shape[0]
    h_pad = prep["h_pad"]
    tile_n = prep["tile_n"]
    N = prep["n_out"]
    act_dtype = prep["act_dtype"]
    w3, b3 = prep["w3"], prep["b3"]
    n_pad = w3.shape[1]
    grid_n = n_pad // tile_n

    # --- Hidden layers: single block, computed once (tiny operands). ---
    h = pl.pallas_call(
        hidden_kernel,
        out_shape=jax.ShapeDtypeStruct((B, h_pad), act_dtype),
    )(z.astype(jnp.float32), prep["w1"], prep["b1"], prep["w2"], prep["b2"])

    # --- Output layer: stream W3 in wide lane-dense tiles. ---
    w_itemsize = jnp.dtype(act_dtype).itemsize
    vmem_need = (
        2 * h_pad * tile_n * w_itemsize   # W3 tile, double-buffered
        + 2 * tile_n * 4                  # b3 tile
        + 2 * B * tile_n * 4              # out tile
        + 2 * B * h_pad * w_itemsize      # resident h
    )
    # Explicit scoped-VMEM budget; stays well under v7x's 64 MiB physical.
    vmem_limit = int(min(max(4 * vmem_need, 32 * 1024 * 1024), 56 * 1024 * 1024))

    out = pl.pallas_call(
        output_kernel,
        out_shape=jax.ShapeDtypeStruct((B, n_pad), jnp.float32),
        grid_spec=pltpu.PrefetchScalarGridSpec(
            num_scalar_prefetch=0,
            grid=(grid_n,),
            in_specs=[
                pl.BlockSpec((B, h_pad), lambda j: (0, 0)),       # h (resident)
                pl.BlockSpec((h_pad, tile_n), lambda j: (0, j)),  # W3 tile
                pl.BlockSpec((1, tile_n), lambda j: (0, j)),      # b3 tile
            ],
            out_specs=pl.BlockSpec((B, tile_n), lambda j: (0, j)),
        ),
        compiler_params=pltpu.CompilerParams(
            dimension_semantics=("parallel",),
            vmem_limit_bytes=vmem_limit,
        ),
    )(h, w3, b3)

    return out[:, :N]


# ----------------------------------------------------------------------------
# Parameter init + pure-JAX reference.
# ----------------------------------------------------------------------------
def init_decoder_params(key, z_dim, c, hidden_dim, image_size, dtype=jnp.float32):
    """Deterministic synthetic parameters (PyTorch-style uniform init ranges)."""
    d_in = z_dim + c
    keys = jax.random.split(key, 6)

    def linear(kw, kb, fan_in, fan_out):
        bound = 1.0 / jnp.sqrt(fan_in)
        w = jax.random.uniform(kw, (fan_in, fan_out), dtype, -bound, bound)
        b = jax.random.uniform(kb, (1, fan_out), dtype, -bound, bound)
        return w, b

    w1, b1 = linear(keys[0], keys[1], d_in, hidden_dim)
    w2, b2 = linear(keys[2], keys[3], hidden_dim, hidden_dim)
    w3, b3 = linear(keys[4], keys[5], hidden_dim, image_size)
    return (w1, b1, w2, b2, w3, b3)


def decoder_reference(z, params, act_dtype=jnp.bfloat16):
    """Pure-JAX reference; mirrors the kernel's bf16 storage of the big layer."""
    w1, b1, w2, b2, w3, b3 = params
    hp = jax.lax.Precision.HIGHEST
    h = jnp.tanh(jnp.dot(z, w1, precision=hp) + b1)
    h = jnp.tanh(jnp.dot(h, w2, precision=hp) + b2)
    hq = h.astype(act_dtype).astype(jnp.float32)
    wq = w3.astype(act_dtype).astype(jnp.float32)
    logits = jnp.dot(hq, wq, precision=hp) + b3
    return jax.nn.sigmoid(logits)


if __name__ == "__main__":
    # Module-default (small) shapes: z_dim=20, c=4 -> input 24; hidden 500;
    # image_size 1629 (non-128-multiple, exercises the padding path).
    B, Z_DIM, C, HIDDEN, IMAGE_SIZE = 8, 20, 4, 500, 1629

    key = jax.random.PRNGKey(0)
    k_z, k_params = jax.random.split(key)

    z = jax.random.normal(k_z, (B, Z_DIM + C), dtype=jnp.float32)
    params = init_decoder_params(k_params, Z_DIM, C, HIDDEN, IMAGE_SIZE)
    prep = prepare_decoder_params(params, tile_n=512)

    out = decoder_forward(z, prep)
    out = jax.block_until_ready(out)

    ref = decoder_reference(z, params)
    assert out.shape == (B, IMAGE_SIZE)
    max_err = float(jnp.max(jnp.abs(out - ref)))
    # bf16 W3/activation storage -> loosened tolerance vs the f32 reference.
    assert max_err < 2e-3, f"mismatch vs reference: max abs err {max_err}"

    print("KERNEL_OK")
</pallas_src>

<mosaic_0001>
module attributes {stable_mosaic.version = 11 : i64} {
  func.func @hidden_kernel(%arg0: memref<8x24xf32, #tpu.memory_space<vmem>>, %arg1: memref<24x512xf32, #tpu.memory_space<vmem>>, %arg2: memref<1x512xf32, #tpu.memory_space<vmem>>, %arg3: memref<512x512xf32, #tpu.memory_space<vmem>>, %arg4: memref<1x512xf32, #tpu.memory_space<vmem>>, %arg5: memref<8x512xbf16, #tpu.memory_space<vmem>>) attributes {dimension_semantics = [], scalar_prefetch = 0 : i64, scratch_operands = 0 : i64, tpu.core_type = #tpu.core_type<tc>} {
    %c0 = arith.constant 0 : index
    %c0_0 = arith.constant 0 : index
    %0 = vector.load %arg0[%c0, %c0_0] : memref<8x24xf32, #tpu.memory_space<vmem>>, vector<8x24xf32>
    %c0_1 = arith.constant 0 : index
    %c0_2 = arith.constant 0 : index
    %1 = vector.load %arg1[%c0_1, %c0_2] : memref<24x512xf32, #tpu.memory_space<vmem>>, vector<24x512xf32>
    %cst = arith.constant dense<0.000000e+00> : vector<8x512xf32>
    %2 = tpu.matmul %0, %1, %cst {dimension_numbers = #tpu.dot_dimension_numbers<[1], [0], [0], [1], [0, 0, 1, 1], [], []>} : vector<8x24xf32>, vector<24x512xf32>, vector<8x512xf32> -> vector<8x512xf32>
    %c0_3 = arith.constant 0 : index
    %c0_4 = arith.constant 0 : index
    %3 = vector.load %arg2[%c0_3, %c0_4] : memref<1x512xf32, #tpu.memory_space<vmem>>, vector<1x512xf32>
    %4 = vector.broadcast %3 : vector<1x512xf32> to vector<8x512xf32>
    %5 = arith.addf %2, %4 : vector<8x512xf32>
    %6 = math.tanh %5 : vector<8x512xf32>
    %c0_5 = arith.constant 0 : index
    %c0_6 = arith.constant 0 : index
    %7 = vector.load %arg3[%c0_5, %c0_6] : memref<512x512xf32, #tpu.memory_space<vmem>>, vector<512x512xf32>
    %cst_7 = arith.constant dense<0.000000e+00> : vector<8x512xf32>
    %8 = tpu.matmul %6, %7, %cst_7 {dimension_numbers = #tpu.dot_dimension_numbers<[1], [0], [0], [1], [0, 0, 1, 1], [], []>} : vector<8x512xf32>, vector<512x512xf32>, vector<8x512xf32> -> vector<8x512xf32>
    %c0_8 = arith.constant 0 : index
    %c0_9 = arith.constant 0 : index
    %9 = vector.load %arg4[%c0_8, %c0_9] : memref<1x512xf32, #tpu.memory_space<vmem>>, vector<1x512xf32>
    %10 = vector.broadcast %9 : vector<1x512xf32> to vector<8x512xf32>
    %11 = arith.addf %8, %10 : vector<8x512xf32>
    %12 = math.tanh %11 : vector<8x512xf32>
    %13 = arith.truncf %12 : vector<8x512xf32> to vector<8x512xbf16>
    %c0_10 = arith.constant 0 : index
    %c0_11 = arith.constant 0 : index
    %14 = vector.load %arg5[%c0_10, %c0_11] : memref<8x512xbf16, #tpu.memory_space<vmem>>, vector<8x512xbf16>
    tpu.vector_store %arg5[%c0_10, %c0_11], %13 {strides = array<i32>} : memref<8x512xbf16, #tpu.memory_space<vmem>>, vector<8x512xbf16>,
    return
  }
}

</mosaic_0001>

<llo_original>
// kernel: tpu_custom_call.1
$region0: #{tpu_custom_call.1}
  #allocation0 [shape = 'u32[]', space=smem, size = 0x4, offset = 0x4, fixed_abs, tag = 'smem constant byte address 0x4 - core index']
  #allocation1 [shape = 'u32[144,128]{1,0:T(1,128)}', space=vmem, size = 0x12000, scoped, tag = 'internal scratch']
  %s0 = inlined_call_operand.hbm [shape: f32[8,24], index: 0, kind: input, shape index: {}]
  %s1 = inlined_call_operand.hbm [shape: f32[24,512], index: 1, kind: input, shape index: {}]
  %s2 = inlined_call_operand.vmem [shape: f32[1,512], index: 2, kind: input, shape index: {}]
  %s3 = inlined_call_operand.hbm [shape: f32[512,512], index: 3, kind: input, shape index: {}]
  %s4 = inlined_call_operand.vmem [shape: f32[1,512], index: 4, kind: input, shape index: {}]
  %s5 = inlined_call_operand.hbm [shape: bf16[8,512], index: 5, kind: output, shape index: {}]
  %s6 = sld [smem:[#allocation0]]
  $region42: #{tpu_custom_call.1} parent=0
    _
  %s8 = ssub.s32 1, %s6
  %s9 = scalar_select 0, %s8, %s6
  $region1: #{tpu_custom_call.1} parent=0
    #allocation2 [shape = 'u8[4096]{0}', space=vmem, size = 0x1000, scoped, tag = 'input window, operand 0, single buffered']
    #allocation3 [shape = 's32[1]{0}', space=sflag, size = 0x4, scoped, tag = 'scoped memory for tpu_custom_call.1']
    #allocation4 [shape = 's32[1]{0}', space=sflag, size = 0x4, scoped, tag = 'scoped memory for tpu_custom_call.1']
    #allocation5 [shape = 'u8[49152]{0}', space=vmem, size = 0xc000, scoped, tag = 'input window, operand 1, single buffered']
    #allocation6 [shape = 's32[1]{0}', space=sflag, size = 0x4, scoped, tag = 'scoped memory for tpu_custom_call.1']
    #allocation7 [shape = 'u8[1048576]{0}', space=vmem, size = 0x100000, scoped, tag = 'input window, operand 3, single buffered']
    #allocation8 [shape = 'u8[8192]{0}', space=vmem, size = 0x2000, scoped, tag = 'output window, operand 0, single buffered']
    %10 = vsyncpa [#allocation3], 0
    %11 = vsyncpa [#allocation6], 0
    %12 = vsyncpa [#allocation4], 0
    // Predicated region
    $region2: #{tpu_custom_call.1} parent=1 // pred_check
      _
    $region3: #{tpu_custom_call.1} parent=1 // pred_check_branch
      %14 = sbr.rel (0) target = $region5
    $region4: #{tpu_custom_call.1} parent=1 // pred_region
      %s16 = ssub.s32 128, 128
      %17 = vsyncadd [#allocation3], %s16
      %s19 = sshll.u32 [#allocation2], 4
      %s20 = int_to_ptr.vmem [resolvable:$true] %s19
      %22 = dma.hbm_to_vmem [thread:$0]  %s0, 128, %s20, [#allocation3]
    $region5: #{tpu_custom_call.1} parent=1 // pred_fallthru
      _
    // Predicated region
    $region6: #{tpu_custom_call.1} parent=1 // pred_check
      _
    $region7: #{tpu_custom_call.1} parent=1 // pred_check_branch
      %24 = sbr.rel (0) target = $region9
    $region8: #{tpu_custom_call.1} parent=1 // pred_region
      %s26 = ssub.s32 1536, 1536
      %27 = vsyncadd [#allocation6], %s26
      %s28 = sshll.u32 [#allocation5], 4
      %s29 = int_to_ptr.vmem [resolvable:$true] %s28
      %34 = dma.hbm_to_vmem [thread:$0]  %s1, 1536, %s29, [#allocation6], 512, 512, 32
    $region9: #{tpu_custom_call.1} parent=1 // pred_fallthru
      _
    // Predicated region
    $region10: #{tpu_custom_call.1} parent=1 // pred_check
      _
    $region11: #{tpu_custom_call.1} parent=1 // pred_check_branch
      %36 = sbr.rel (0) target = $region13
    $region12: #{tpu_custom_call.1} parent=1 // pred_region
      _
    $region13: #{tpu_custom_call.1} parent=1 // pred_fallthru
      _
    // Predicated region
    $region14: #{tpu_custom_call.1} parent=1 // pred_check
      _
    $region15: #{tpu_custom_call.1} parent=1 // pred_check_branch
      %38 = sbr.rel (0) target = $region17
    $region16: #{tpu_custom_call.1} parent=1 // pred_region
      %s40 = ssub.s32 32768, 32768
      %41 = vsyncadd [#allocation6], %s40
      %s42 = sshll.u32 [#allocation7], 4
      %s43 = int_to_ptr.vmem [resolvable:$true] %s42
      %48 = dma.hbm_to_vmem [thread:$0]  %s3, 32768, %s43, [#allocation6], 512, 512, 32
    $region17: #{tpu_custom_call.1} parent=1 // pred_fallthru
      _
    // Predicated region
    $region18: #{tpu_custom_call.1} parent=1 // pred_check
      _
    $region19: #{tpu_custom_call.1} parent=1 // pred_check_branch
      %50 = sbr.rel (0) target = $region21
    $region20: #{tpu_custom_call.1} parent=1 // pred_region
      _
    $region21: #{tpu_custom_call.1} parent=1 // pred_fallthru
      _
    // Predicated region
    $region22: #{tpu_custom_call.1} parent=1 // pred_check
      _
    $region23: #{tpu_custom_call.1} parent=1 // pred_check_branch
      %52 = sbr.rel (0) target = $region25
    $region24: #{tpu_custom_call.1} parent=1 // pred_region
      %53 = dma.done [#allocation3], 128
    $region25: #{tpu_custom_call.1} parent=1 // pred_fallthru
      _
    // Predicated region
    $region26: #{tpu_custom_call.1} parent=1 // pred_check
      _
    $region27: #{tpu_custom_call.1} parent=1 // pred_check_branch
      %55 = sbr.rel (0) target = $region29
    $region28: #{tpu_custom_call.1} parent=1 // pred_region
      %56 = dma.done [#allocation6], 1536
    $region29: #{tpu_custom_call.1} parent=1 // pred_fallthru
      _
    // Predicated region
    $region30: #{tpu_custom_call.1} parent=1 // pred_check
      _
    $region31: #{tpu_custom_call.1} parent=1 // pred_check_branch
      %58 = sbr.rel (0) target = $region33
    $region32: #{tpu_custom_call.1} parent=1 // pred_region
      %59 = dma.done [#allocation6], 32768
    $region33: #{tpu_custom_call.1} parent=1 // pred_fallthru
      _
    %v60 = vld [vmem:[#allocation2] sm:$0xff]
    %v61 = vld [vmem:[#allocation5] sm:$0xff]
    %v62 = vld [vmem:[#allocation5 + $0x8] sm:$0xff]
    %v63 = vld [vmem:[#allocation5 + $0x10] sm:$0xff]
    %v64 = vld [vmem:[#allocation5 + $0x18] sm:$0xff]
    %v65 = vld [vmem:[#allocation5 + $0x20] sm:$0xff]
    %v66 = vld [vmem:[#allocation5 + $0x28] sm:$0xff]
    %v67 = vld [vmem:[#allocation5 + $0x30] sm:$0xff]
    %v68 = vld [vmem:[#allocation5 + $0x38] sm:$0xff]
    %v69 = vld [vmem:[#allocation5 + $0x40] sm:$0xff]
    %v70 = vld [vmem:[#allocation5 + $0x48] sm:$0xff]
    %v71 = vld [vmem:[#allocation5 + $0x50] sm:$0xff]
    %v72 = vld [vmem:[#allocation5 + $0x58] sm:$0xff]
    %v73 = vld [vmem:[%s2] sm:$0xf]
    %v75 = vlaneseq
    %v76 = vshrl.u32 %v75, 7
    %v77 = vsub.s32 0, %v76
    %v78 = vrot.slane %v73, %v77
    %v79 = vlaneseq
    %v80 = vshrl.u32 %v79, 7
    %v81 = vsub.s32 1, %v80
    %v82 = vrot.slane %v73, %v81
    %v83 = vlaneseq
    %v84 = vshrl.u32 %v83, 7
    %v85 = vsub.s32 2, %v84
    %v86 = vrot.slane %v73, %v85
    %v87 = vlaneseq
    %v88 = vshrl.u32 %v87, 7
    %v89 = vsub.s32 3, %v88
    %v90 = vrot.slane %v73, %v89
    %vm95 = vcmask 195584
    %v97 = vsel %vm95, %v60, 0
    %99 = vmatprep.subr.mxu0 %v62
    %100 = vmatpush1.msra.mxu0 %v61
    %101 = vmatprep.subr.mxu0 %v66
    %102 = vmatpush1.msra.mxu0 %v65
    %103 = vmatprep.subr.mxu0 %v70
    %104 = vmatpush1.msra.mxu0 %v69
    %105 = vmatprep.subr.mxu0 0.0
    %106 = vmatpush1.msra.mxu0 0.0
    %107 = vmatprep.subr.mxu0 0.0
    %108 = vmatpush1.msra.mxu0 0.0
    %109 = vmatprep.subr.mxu0 0.0
    %110 = vmatpush1.msra.mxu0 0.0
    %111 = vmatprep.subr.mxu0 0.0
    %112 = vmatpush1.msra.mxu0 0.0
    %113 = vmatprep.subr.mxu0 0.0
    %114 = vmatpush1.msra.mxu0 0.0
    %115 = vmatprep.subr.mxu0 0.0
    %116 = vmatpush1.msra.mxu0 0.0
    %117 = vmatprep.subr.mxu0 0.0
    %118 = vmatpush1.msra.mxu0 0.0
    %119 = vmatprep.subr.mxu0 0.0
    %120 = vmatpush1.msra.mxu0 0.0
    %121 = vmatprep.subr.mxu0 0.0
    %122 = vmatpush1.msra.mxu0 0.0
    %123 = vmatprep.subr.mxu0 0.0
    %124 = vmatpush1.msra.mxu0 0.0
    %125 = vmatprep.subr.mxu0 0.0
    %126 = vmatpush1.msra.mxu0 0.0
    %127 = vmatprep.subr.mxu0 0.0
    %128 = vmatpush1.msra.mxu0 0.0
    %129 = vmatprep.subr.mxu0 0.0
    %130 = vmatpush1.msra.mxu0 0.0
    %131 = vmatprep.subr.mxu0 0.0
    %132 = vmatpush1.msra.mxu0 0.0
    %133 = vmatprep.subr.mxu0 0.0
    %134 = vmatpush1.msra.mxu0 0.0
    %135 = vmatprep.subr.mxu0 0.0
    %136 = vmatpush1.msra.mxu0 0.0
    %137 = vmatprep.subr.mxu0 0.0
    %138 = vmatpush1.msra.mxu0 0.0
    %139 = vmatprep.subr.mxu0 0.0
    %140 = vmatpush1.msra.mxu0 0.0
    %141 = vmatprep.subr.mxu0 0.0
    %142 = vmatpush1.msra.mxu0 0.0
    %143 = vmatprep.subr.mxu0 0.0
    %144 = vmatpush1.msra.mxu0 0.0
    %145 = vmatprep.subr.mxu0 0.0
    %146 = vmatpush1.msra.mxu0 0.0
    %147 = vmatprep.subr.mxu0 0.0
    %148 = vmatpush1.msra.mxu0 0.0
    %149 = vmatprep.subr.mxu0 0.0
    %150 = vmatpush1.msra.mxu0 0.0
    %151 = vmatprep.subr.mxu0 0.0
    %152 = vmatpush1.msra.mxu0 0.0
    %153 = vmatprep.subr.mxu0 0.0
    %154 = vmatpush1.msra.mxu0 0.0
    %155 = vmatprep.subr.mxu0 0.0
    %156 = vmatpush1.msra.mxu0 0.0
    %157 = vmatprep.subr.mxu0 0.0
    %158 = vmatpush1.msra.mxu0 0.0
    %159 = vmatprep.subr.mxu0 0.0
    %160 = vmatpush1.msra.mxu0 0.0
    %161 = vmatprep.subr.mxu0 0.0
    %162 = vmatpush1.msra.mxu0 0.0
    %163 = vmatprep.mubr.f32.mxu0 0.0
    %164 = vmatmul.mubr.f32.gmra.mrb[0].mxu0 %v97
    %v165 = vpop.f32.mrb[0].mxu0
    %v166 = vadd.f32 %v78, %v165
    %v167 = vpop.f32.mrb[0].mxu0
    %v168 = vadd.f32 %v82, %v167
    %169 = vdwg.mxu0
    %170 = vmatprep.subr.mxu0 %v64
    %171 = vmatpush1.msra.mxu0 %v63
    %172 = vmatprep.subr.mxu0 %v68
    %173 = vmatpush1.msra.mxu0 %v67
    %174 = vmatprep.subr.mxu0 %v72
    %175 = vmatpush1.msra.mxu0 %v71
    %176 = vmatprep.subr.mxu0 0.0
    %177 = vmatpush1.msra.mxu0 0.0
    %178 = vmatprep.subr.mxu0 0.0
    %179 = vmatpush1.msra.mxu0 0.0
    %180 = vmatprep.subr.mxu0 0.0
    %181 = vmatpush1.msra.mxu0 0.0
    %182 = vmatprep.subr.mxu0 0.0
    %183 = vmatpush1.msra.mxu0 0.0
    %184 = vmatprep.subr.mxu0 0.0
    %185 = vmatpush1.msra.mxu0 0.0
    %186 = vmatprep.subr.mxu0 0.0
    %187 = vmatpush1.msra.mxu0 0.0
    %188 = vmatprep.subr.mxu0 0.0
    %189 = vmatpush1.msra.mxu0 0.0
    %190 = vmatprep.subr.mxu0 0.0
    %191 = vmatpush1.msra.mxu0 0.0
    %192 = vmatprep.subr.mxu0 0.0
    %193 = vmatpush1.msra.mxu0 0.0
    %194 = vmatprep.subr.mxu0 0.0
    %195 = vmatpush1.msra.mxu0 0.0
    %196 = vmatprep.subr.mxu0 0.0
    %197 = vmatpush1.msra.mxu0 0.0
    %198 = vmatprep.subr.mxu0 0.0
    %199 = vmatpush1.msra.mxu0 0.0
    %200 = vmatprep.subr.mxu0 0.0
    %201 = vmatpush1.msra.mxu0 0.0
    %202 = vmatprep.subr.mxu0 0.0
    %203 = vmatpush1.msra.mxu0 0.0
    %204 = vmatprep.subr.mxu0 0.0
    %205 = vmatpush1.msra.mxu0 0.0
    %206 = vmatprep.subr.mxu0 0.0
    %207 = vmatpush1.msra.mxu0 0.0
    %208 = vmatprep.subr.mxu0 0.0
    %209 = vmatpush1.msra.mxu0 0.0
    %210 = vmatprep.subr.mxu0 0.0
    %211 = vmatpush1.msra.mxu0 0.0
    %212 = vmatprep.subr.mxu0 0.0
    %213 = vmatpush1.msra.mxu0 0.0
    %214 = vmatprep.subr.mxu0 0.0
    %215 = vmatpush1.msra.mxu0 0.0
    %216 = vmatprep.subr.mxu0 0.0
    %217 = vmatpush1.msra.mxu0 0.0
    %218 = vmatprep.subr.mxu0 0.0
    %219 = vmatpush1.msra.mxu0 0.0
    %220 = vmatprep.subr.mxu0 0.0
    %221 = vmatpush1.msra.mxu0 0.0
    %222 = vmatprep.subr.mxu0 0.0
    %223 = vmatpush1.msra.mxu0 0.0
    %224 = vmatprep.subr.mxu0 0.0
    %225 = vmatpush1.msra.mxu0 0.0
    %226 = vmatprep.subr.mxu0 0.0
    %227 = vmatpush1.msra.mxu0 0.0
    %228 = vmatprep.subr.mxu0 0.0
    %229 = vmatpush1.msra.mxu0 0.0
    %230 = vmatprep.subr.mxu0 0.0
    %231 = vmatpush1.msra.mxu0 0.0
    %232 = vmatprep.subr.mxu0 0.0
    %233 = vmatpush1.msra.mxu0 0.0
    %234 = vmatprep.mubr.f32.mxu0 0.0
    %235 = vmatmul.mubr.f32.gmra.mrb[0].mxu0 %v97
    %v236 = vpop.f32.mrb[0].mxu0
    %v237 = vadd.f32 %v86, %v236
    %v238 = vpop.f32.mrb[0].mxu0
    %v239 = vadd.f32 %v90, %v238
    %240 = vdwg.mxu0
    %v241 = vtanh.pop %v166
    %v242 = vtanh.pop %v168
    %v243 = vtanh.pop %v237
    %v244 = vtanh.pop %v239
    %v245 = vld [vmem:[#allocation7] sm:$0xff]
    %v246 = vld [vmem:[#allocation7 + $0x8] sm:$0xff]
    %v247 = vld [vmem:[#allocation7 + $0x10] sm:$0xff]
    %v248 = vld [vmem:[#allocation7 + $0x18] sm:$0xff]
    %v249 = vld [vmem:[#allocation7 + $0x20] sm:$0xff]
    %v250 = vld [vmem:[#allocation7 + $0x28] sm:$0xff]
    %v251 = vld [vmem:[#allocation7 + $0x30] sm:$0xff]
    %v252 = vld [vmem:[#allocation7 + $0x38] sm:$0xff]
    %v253 = vld [vmem:[#allocation7 + $0x40] sm:$0xff]
    %v254 = vld [vmem:[#allocation7 + $0x48] sm:$0xff]
    %v255 = vld [vmem:[#allocation7 + $0x50] sm:$0xff]
    %v256 = vld [vmem:[#allocation7 + $0x58] sm:$0xff]
    %v257 = vld [vmem:[#allocation7 + $0x60] sm:$0xff]
    %v258 = vld [vmem:[#allocation7 + $0x68] sm:$0xff]
    %v259 = vld [vmem:[#allocation7 + $0x70] sm:$0xff]
    %v260 = vld [vmem:[#allocation7 + $0x78] sm:$0xff]
    %v261 = vld [vmem:[#allocation7 + $0x80] sm:$0xff]
    %v262 = vld [vmem:[#allocation7 + $0x88] sm:$0xff]
    %v263 = vld [vmem:[#allocation7 + $0x90] sm:$0xff]
    %v264 = vld [vmem:[#allocation7 + $0x98] sm:$0xff]
    %v265 = vld [vmem:[#allocation7 + $0xa0] sm:$0xff]
    %v266 = vld [vmem:[#allocation7 + $0xa8] sm:$0xff]
    %v267 = vld [vmem:[#allocation7 + $0xb0] sm:$0xff]
    %v268 = vld [vmem:[#allocation7 + $0xb8] sm:$0xff]
    %v269 = vld [vmem:[#allocation7 + $0xc0] sm:$0xff]
    %v270 = vld [vmem:[#allocation7 + $0xc8] sm:$0xff]
    %v271 = vld [vmem:[#allocation7 + $0xd0] sm:$0xff]
    %v272 = vld [vmem:[#allocation7 + $0xd8] sm:$0xff]
    %v273 = vld [vmem:[#allocation7 + $0xe0] sm:$0xff]
    %v274 = vld [vmem:[#allocation7 + $0xe8] sm:$0xff]
    %v275 = vld [vmem:[#allocation7 + $0xf0] sm:$0xff]
    %v276 = vld [vmem:[#allocation7 + $0xf8] sm:$0xff]
    %v277 = vld [vmem:[#allocation7 + $0x100] sm:$0xff]
    %v278 = vld [vmem:[#allocation7 + $0x108] sm:$0xff]
    %v279 = vld [vmem:[#allocation7 + $0x110] sm:$0xff]
    %v280 = vld [vmem:[#allocation7 + $0x118] sm:$0xff]
    %v281 = vld [vmem:[#allocation7 + $0x120] sm:$0xff]
    %v282 = vld [vmem:[#allocation7 + $0x128] sm:$0xff]
    %v283 = vld [vmem:[#allocation7 + $0x130] sm:$0xff]
    %v284 = vld [vmem:[#allocation7 + $0x138] sm:$0xff]
    %v285 = vld [vmem:[#allocation7 + $0x140] sm:$0xff]
    %v286 = vld [vmem:[#allocation7 + $0x148] sm:$0xff]
    %v287 = vld [vmem:[#allocation7 + $0x150] sm:$0xff]
    %v288 = vld [vmem:[#allocation7 + $0x158] sm:$0xff]
    %v289 = vld [vmem:[#allocation7 + $0x160] sm:$0xff]
    %v290 = vld [vmem:[#allocation7 + $0x168] sm:$0xff]
    %v291 = vld [vmem:[#allocation7 + $0x170] sm:$0xff]
    %v292 = vld [vmem:[#allocation7 + $0x178] sm:$0xff]
    %v293 = vld [vmem:[#allocation7 + $0x180] sm:$0xff]
    %v294 = vld [vmem:[#allocation7 + $0x188] sm:$0xff]
    %v295 = vld [vmem:[#allocation7 + $0x190] sm:$0xff]
    %v296 = vld [vmem:[#allocation7 + $0x198] sm:$0xff]
    %v297 = vld [vmem:[#allocation7 + $0x1a0] sm:$0xff]
    %v298 = vld [vmem:[#allocation7 + $0x1a8] sm:$0xff]
    %v299 = vld [vmem:[#allocation7 + $0x1b0] sm:$0xff]
    %v300 = vld [vmem:[#allocation7 + $0x1b8] sm:$0xff]
    %v301 = vld [vmem:[#allocation7 + $0x1c0] sm:$0xff]
    %v302 = vld [vmem:[#allocation7 + $0x1c8] sm:$0xff]
    %v303 = vld [vmem:[#allocation7 + $0x1d0] sm:$0xff]
    %v304 = vld [vmem:[#allocation7 + $0x1d8] sm:$0xff]
    %v305 = vld [vmem:[#allocation7 + $0x1e0] sm:$0xff]
    %v306 = vld [vmem:[#allocation7 + $0x1e8] sm:$0xff]
    %v307 = vld [vmem:[#allocation7 + $0x1f0] sm:$0xff]
    %v308 = vld [vmem:[#allocation7 + $0x1f8] sm:$0xff]
    %v309 = vld [vmem:[#allocation7 + $0x200] sm:$0xff]
    %v310 = vld [vmem:[#allocation7 + $0x208] sm:$0xff]
    %v311 = vld [vmem:[#allocation7 + $0x210] sm:$0xff]
    %v312 = vld [vmem:[#allocation7 + $0x218] sm:$0xff]
    %v313 = vld [vmem:[#allocation7 + $0x220] sm:$0xff]
    %v314 = vld [vmem:[#allocation7 + $0x228] sm:$0xff]
    %v315 = vld [vmem:[#allocation7 + $0x230] sm:$0xff]
    %v316 = vld [vmem:[#allocation7 + $0x238] sm:$0xff]
    %v317 = vld [vmem:[#allocation7 + $0x240] sm:$0xff]
    %v318 = vld [vmem:[#allocation7 + $0x248] sm:$0xff]
    %v319 = vld [vmem:[#allocation7 + $0x250] sm:$0xff]
    %v320 = vld [vmem:[#allocation7 + $0x258] sm:$0xff]
    %v321 = vld [vmem:[#allocation7 + $0x260] sm:$0xff]
    %v322 = vld [vmem:[#allocation7 + $0x268] sm:$0xff]
    %v323 = vld [vmem:[#allocation7 + $0x270] sm:$0xff]
    %v324 = vld [vmem:[#allocation7 + $0x278] sm:$0xff]
    %v325 = vld [vmem:[#allocation7 + $0x280] sm:$0xff]
    %v326 = vld [vmem:[#allocation7 + $0x288] sm:$0xff]
    %v327 = vld [vmem:[#allocation7 + $0x290] sm:$0xff]
    %v328 = vld [vmem:[#allocation7 + $0x298] sm:$0xff]
    %v329 = vld [vmem:[#allocation7 + $0x2a0] sm:$0xff]
    %v330 = vld [vmem:[#allocation7 + $0x2a8] sm:$0xff]
    %v331 = vld [vmem:[#allocation7 + $0x2b0] sm:$0xff]
    %v332 = vld [vmem:[#allocation7 + $0x2b8] sm:$0xff]
    %v333 = vld [vmem:[#allocation7 + $0x2c0] sm:$0xff]
    %v334 = vld [vmem:[#allocation7 + $0x2c8] sm:$0xff]
    %v335 = vld [vmem:[#allocation7 + $0x2d0] sm:$0xff]
    %v336 = vld [vmem:[#allocation7 + $0x2d8] sm:$0xff]
    %v337 = vld [vmem:[#allocation7 + $0x2e0] sm:$0xff]
    %v338 = vld [vmem:[#allocation7 + $0x2e8] sm:$0xff]
    %v339 = vld [vmem:[#allocation7 + $0x2f0] sm:$0xff]
    %v340 = vld [vmem:[#allocation7 + $0x2f8] sm:$0xff]
    %v341 = vld [vmem:[#allocation7 + $0x300] sm:$0xff]
    %v342 = vld [vmem:[#allocation7 + $0x308] sm:$0xff]
    %v343 = vld [vmem:[#allocation7 + $0x310] sm:$0xff]
    %v344 = vld [vmem:[#allocation7 + $0x318] sm:$0xff]
    %v345 = vld [vmem:[#allocation7 + $0x320] sm:$0xff]
    %v346 = vld [vmem:[#allocation7 + $0x328] sm:$0xff]
    %v347 = vld [vmem:[#allocation7 + $0x330] sm:$0xff]
    %v348 = vld [vmem:[#allocation7 + $0x338] sm:$0xff]
    %v349 = vld [vmem:[#allocation7 + $0x340] sm:$0xff]
    %v350 = vld [vmem:[#allocation7 + $0x348] sm:$0xff]
    %v351 = vld [vmem:[#allocation7 + $0x350] sm:$0xff]
    %v352 = vld [vmem:[#allocation7 + $0x358] sm:$0xff]
    %v353 = vld [vmem:[#allocation7 + $0x360] sm:$0xff]
    %v354 = vld [vmem:[#allocation7 + $0x368] sm:$0xff]
    %v355 = vld [vmem:[#allocation7 + $0x370] sm:$0xff]
    %v356 = vld [vmem:[#allocation7 + $0x378] sm:$0xff]
    %v357 = vld [vmem:[#allocation7 + $0x380] sm:$0xff]
    %v358 = vld [vmem:[#allocation7 + $0x388] sm:$0xff]
    %v359 = vld [vmem:[#allocation7 + $0x390] sm:$0xff]
    %v360 = vld [vmem:[#allocation7 + $0x398] sm:$0xff]
    %v361 = vld [vmem:[#allocation7 + $0x3a0] sm:$0xff]
    %v362 = vld [vmem:[#allocation7 + $0x3a8] sm:$0xff]
    %v363 = vld [vmem:[#allocation7 + $0x3b0] sm:$0xff]
    %v364 = vld [vmem:[#allocation7 + $0x3b8] sm:$0xff]
    %v365 = vld [vmem:[#allocation7 + $0x3c0] sm:$0xff]
    %v366 = vld [vmem:[#allocation7 + $0x3c8] sm:$0xff]
    %v367 = vld [vmem:[#allocation7 + $0x3d0] sm:$0xff]
    %v368 = vld [vmem:[#allocation7 + $0x3d8] sm:$0xff]
    %v369 = vld [vmem:[#allocation7 + $0x3e0] sm:$0xff]
    %v370 = vld [vmem:[#allocation7 + $0x3e8] sm:$0xff]
    %v371 = vld [vmem:[#allocation7 + $0x3f0] sm:$0xff]
    %v372 = vld [vmem:[#allocation7 + $0x3f8] sm:$0xff]
    %v373 = vld [vmem:[#allocation7 + $0x400] sm:$0xff]
    %v374 = vld [vmem:[#allocation7 + $0x408] sm:$0xff]
    %v375 = vld [vmem:[#allocation7 + $0x410] sm:$0xff]
    %v376 = vld [vmem:[#allocation7 + $0x418] sm:$0xff]
    %v377 = vld [vmem:[#allocation7 + $0x420] sm:$0xff]
    %v378 = vld [vmem:[#allocation7 + $0x428] sm:$0xff]
    %v379 = vld [vmem:[#allocation7 + $0x430] sm:$0xff]
    %v380 = vld [vmem:[#allocation7 + $0x438] sm:$0xff]
    %v381 = vld [vmem:[#allocation7 + $0x440] sm:$0xff]
    %v382 = vld [vmem:[#allocation7 + $0x448] sm:$0xff]
    %v383 = vld [vmem:[#allocation7 + $0x450] sm:$0xff]
    %v384 = vld [vmem:[#allocation7 + $0x458] sm:$0xff]
    %v385 = vld [vmem:[#allocation7 + $0x460] sm:$0xff]
    %v386 = vld [vmem:[#allocation7 + $0x468] sm:$0xff]
    %v387 = vld [vmem:[#allocation7 + $0x470] sm:$0xff]
    %v388 = vld [vmem:[#allocation7 + $0x478] sm:$0xff]
    %v389 = vld [vmem:[#allocation7 + $0x480] sm:$0xff]
    %v390 = vld [vmem:[#allocation7 + $0x488] sm:$0xff]
    %v391 = vld [vmem:[#allocation7 + $0x490] sm:$0xff]
    %v392 = vld [vmem:[#allocation7 + $0x498] sm:$0xff]
    %v393 = vld [vmem:[#allocation7 + $0x4a0] sm:$0xff]
    %v394 = vld [vmem:[#allocation7 + $0x4a8] sm:$0xff]
    %v395 = vld [vmem:[#allocation7 + $0x4b0] sm:$0xff]
    %v396 = vld [vmem:[#allocation7 + $0x4b8] sm:$0xff]
    %v397 = vld [vmem:[#allocation7 + $0x4c0] sm:$0xff]
    %v398 = vld [vmem:[#allocation7 + $0x4c8] sm:$0xff]
    %v399 = vld [vmem:[#allocation7 + $0x4d0] sm:$0xff]
    %v400 = vld [vmem:[#allocation7 + $0x4d8] sm:$0xff]
    %v401 = vld [vmem:[#allocation7 + $0x4e0] sm:$0xff]
    %v402 = vld [vmem:[#allocation7 + $0x4e8] sm:$0xff]
    %v403 = vld [vmem:[#allocation7 + $0x4f0] sm:$0xff]
    %v404 = vld [vmem:[#allocation7 + $0x4f8] sm:$0xff]
    %v405 = vld [vmem:[#allocation7 + $0x500] sm:$0xff]
    %v406 = vld [vmem:[#allocation7 + $0x508] sm:$0xff]
    %v407 = vld [vmem:[#allocation7 + $0x510] sm:$0xff]
    %v408 = vld [vmem:[#allocation7 + $0x518] sm:$0xff]
    %v409 = vld [vmem:[#allocation7 + $0x520] sm:$0xff]
    %v410 = vld [vmem:[#allocation7 + $0x528] sm:$0xff]
    %v411 = vld [vmem:[#allocation7 + $0x530] sm:$0xff]
    %v412 = vld [vmem:[#allocation7 + $0x538] sm:$0xff]
    %v413 = vld [vmem:[#allocation7 + $0x540] sm:$0xff]
    %v414 = vld [vmem:[#allocation7 + $0x548] sm:$0xff]
    %v415 = vld [vmem:[#allocation7 + $0x550] sm:$0xff]
    %v416 = vld [vmem:[#allocation7 + $0x558] sm:$0xff]
    %v417 = vld [vmem:[#allocation7 + $0x560] sm:$0xff]
    %v418 = vld [vmem:[#allocation7 + $0x568] sm:$0xff]
    %v419 = vld [vmem:[#allocation7 + $0x570] sm:$0xff]
    %v420 = vld [vmem:[#allocation7 + $0x578] sm:$0xff]
    %v421 = vld [vmem:[#allocation7 + $0x580] sm:$0xff]
    %v422 = vld [vmem:[#allocation7 + $0x588] sm:$0xff]
    %v423 = vld [vmem:[#allocation7 + $0x590] sm:$0xff]
    %v424 = vld [vmem:[#allocation7 + $0x598] sm:$0xff]
    %v425 = vld [vmem:[#allocation7 + $0x5a0] sm:$0xff]
    %v426 = vld [vmem:[#allocation7 + $0x5a8] sm:$0xff]
    %v427 = vld [vmem:[#allocation7 + $0x5b0] sm:$0xff]
    %v428 = vld [vmem:[#allocation7 + $0x5b8] sm:$0xff]
    %v429 = vld [vmem:[#allocation7 + $0x5c0] sm:$0xff]
    %v430 = vld [vmem:[#allocation7 + $0x5c8] sm:$0xff]
    %v431 = vld [vmem:[#allocation7 + $0x5d0] sm:$0xff]
    %v432 = vld [vmem:[#allocation7 + $0x5d8] sm:$0xff]
    %v433 = vld [vmem:[#allocation7 + $0x5e0] sm:$0xff]
    %v434 = vld [vmem:[#allocation7 + $0x5e8] sm:$0xff]
    %v435 = vld [vmem:[#allocation7 + $0x5f0] sm:$0xff]
    %v436 = vld [vmem:[#allocation7 + $0x5f8] sm:$0xff]
    %v437 = vld [vmem:[#allocation7 + $0x600] sm:$0xff]
    %v438 = vld [vmem:[#allocation7 + $0x608] sm:$0xff]
    %v439 = vld [vmem:[#allocation7 + $0x610] sm:$0xff]
    %v440 = vld [vmem:[#allocation7 + $0x618] sm:$0xff]
    %v441 = vld [vmem:[#allocation7 + $0x620] sm:$0xff]
    %v442 = vld [vmem:[#allocation7 + $0x628] sm:$0xff]
    %v443 = vld [vmem:[#allocation7 + $0x630] sm:$0xff]
    %v444 = vld [vmem:[#allocation7 + $0x638] sm:$0xff]
    %v445 = vld [vmem:[#allocation7 + $0x640] sm:$0xff]
    %v446 = vld [vmem:[#allocation7 + $0x648] sm:$0xff]
    %v447 = vld [vmem:[#allocation7 + $0x650] sm:$0xff]
    %v448 = vld [vmem:[#allocation7 + $0x658] sm:$0xff]
    %v449 = vld [vmem:[#allocation7 + $0x660] sm:$0xff]
    %v450 = vld [vmem:[#allocation7 + $0x668] sm:$0xff]
    %v451 = vld [vmem:[#allocation7 + $0x670] sm:$0xff]
    %v452 = vld [vmem:[#allocation7 + $0x678] sm:$0xff]
    %v453 = vld [vmem:[#allocation7 + $0x680] sm:$0xff]
    %v454 = vld [vmem:[#allocation7 + $0x688] sm:$0xff]
    %v455 = vld [vmem:[#allocation7 + $0x690] sm:$0xff]
    %v456 = vld [vmem:[#allocation7 + $0x698] sm:$0xff]
    %v457 = vld [vmem:[#allocation7 + $0x6a0] sm:$0xff]
    %v458 = vld [vmem:[#allocation7 + $0x6a8] sm:$0xff]
    %v459 = vld [vmem:[#allocation7 + $0x6b0] sm:$0xff]
    %v460 = vld [vmem:[#allocation7 + $0x6b8] sm:$0xff]
    %v461 = vld [vmem:[#allocation7 + $0x6c0] sm:$0xff]
    %v462 = vld [vmem:[#allocation7 + $0x6c8] sm:$0xff]
    %v463 = vld [vmem:[#allocation7 + $0x6d0] sm:$0xff]
    %v464 = vld [vmem:[#allocation7 + $0x6d8] sm:$0xff]
    %v465 = vld [vmem:[#allocation7 + $0x6e0] sm:$0xff]
    %v466 = vld [vmem:[#allocation7 + $0x6e8] sm:$0xff]
    %v467 = vld [vmem:[#allocation7 + $0x6f0] sm:$0xff]
    %v468 = vld [vmem:[#allocation7 + $0x6f8] sm:$0xff]
    %v469 = vld [vmem:[#allocation7 + $0x700] sm:$0xff]
    %v470 = vld [vmem:[#allocation7 + $0x708] sm:$0xff]
    %v471 = vld [vmem:[#allocation7 + $0x710] sm:$0xff]
    %v472 = vld [vmem:[#allocation7 + $0x718] sm:$0xff]
    %v473 = vld [vmem:[#allocation7 + $0x720] sm:$0xff]
    %v474 = vld [vmem:[#allocation7 + $0x728] sm:$0xff]
    %v475 = vld [vmem:[#allocation7 + $0x730] sm:$0xff]
    %v476 = vld [vmem:[#allocation7 + $0x738] sm:$0xff]
    %v477 = vld [vmem:[#allocation7 + $0x740] sm:$0xff]
    %v478 = vld [vmem:[#allocation7 + $0x748] sm:$0xff]
    %v479 = vld [vmem:[#allocation7 + $0x750] sm:$0xff]
    %v480 = vld [vmem:[#allocation7 + $0x758] sm:$0xff]
    %v481 = vld [vmem:[#allocation7 + $0x760] sm:$0xff]
    %v482 = vld [vmem:[#allocation7 + $0x768] sm:$0xff]
    %v483 = vld [vmem:[#allocation7 + $0x770] sm:$0xff]
    %v484 = vld [vmem:[#allocation7 + $0x778] sm:$0xff]
    %v485 = vld [vmem:[#allocation7 + $0x780] sm:$0xff]
    %v486 = vld [vmem:[#allocation7 + $0x788] sm:$0xff]
    %v487 = vld [vmem:[#allocation7 + $0x790] sm:$0xff]
    %v488 = vld [vmem:[#allocation7 + $0x798] sm:$0xff]
    %v489 = vld [vmem:[#allocation7 + $0x7a0] sm:$0xff]
    %v490 = vld [vmem:[#allocation7 + $0x7a8] sm:$0xff]
    %v491 = vld [vmem:[#allocation7 + $0x7b0] sm:$0xff]
    %v492 = vld [vmem:[#allocation7 + $0x7b8] sm:$0xff]
    %v493 = vld [vmem:[#allocation7 + $0x7c0] sm:$0xff]
    %v494 = vld [vmem:[#allocation7 + $0x7c8] sm:$0xff]
    %v495 = vld [vmem:[#allocation7 + $0x7d0] sm:$0xff]
    %v496 = vld [vmem:[#allocation7 + $0x7d8] sm:$0xff]
    %v497 = vld [vmem:[#allocation7 + $0x7e0] sm:$0xff]
    %v498 = vld [vmem:[#allocation7 + $0x7e8] sm:$0xff]
    %v499 = vld [vmem:[#allocation7 + $0x7f0] sm:$0xff]
    %v500 = vld [vmem:[#allocation7 + $0x7f8] sm:$0xff]
    %v501 = vld [vmem:[%s4] sm:$0xf]
    %v503 = vlaneseq
    %v504 = vshrl.u32 %v503, 7
    %v505 = vsub.s32 0, %v504
    %v506 = vrot.slane %v501, %v505
    %v507 = vlaneseq
    %v508 = vshrl.u32 %v507, 7
    %v509 = vsub.s32 1, %v508
    %v510 = vrot.slane %v501, %v509
    %v511 = vlaneseq
    %v512 = vshrl.u32 %v511, 7
    %v513 = vsub.s32 2, %v512
    %v514 = vrot.slane %v501, %v513
    %v515 = vlaneseq
    %v516 = vshrl.u32 %v515, 7
    %v517 = vsub.s32 3, %v516
    %v518 = vrot.slane %v501, %v517
    %523 = vmatprep.subr.mxu0 %v246
    %524 = vmatpush1.msra.mxu0 %v245
    %525 = vmatprep.subr.mxu0 %v250
    %526 = vmatpush1.msra.mxu0 %v249
    %527 = vmatprep.subr.mxu0 %v254
    %528 = vmatpush1.msra.mxu0 %v253
    %529 = vmatprep.subr.mxu0 %v258
    %530 = vmatpush1.msra.mxu0 %v257
    %531 = vmatprep.subr.mxu0 %v262
    %532 = vmatpush1.msra.mxu0 %v261
    %533 = vmatprep.subr.mxu0 %v266
    %534 = vmatpush1.msra.mxu0 %v265
    %535 = vmatprep.subr.mxu0 %v270
    %536 = vmatpush1.msra.mxu0 %v269
    %537 = vmatprep.subr.mxu0 %v274
    %538 = vmatpush1.msra.mxu0 %v273
    %539 = vmatprep.subr.mxu0 %v278
    %540 = vmatpush1.msra.mxu0 %v277
    %541 = vmatprep.subr.mxu0 %v282
    %542 = vmatpush1.msra.mxu0 %v281
    %543 = vmatprep.subr.mxu0 %v286
    %544 = vmatpush1.msra.mxu0 %v285
    %545 = vmatprep.subr.mxu0 %v290
    %546 = vmatpush1.msra.mxu0 %v289
    %547 = vmatprep.subr.mxu0 %v294
    %548 = vmatpush1.msra.mxu0 %v293
    %549 = vmatprep.subr.mxu0 %v298
    %550 = vmatpush1.msra.mxu0 %v297
    %551 = vmatprep.subr.mxu0 %v302
    %552 = vmatpush1.msra.mxu0 %v301
    %553 = vmatprep.subr.mxu0 %v306
    %554 = vmatpush1.msra.mxu0 %v305
    %555 = vmatprep.subr.mxu0 %v310
    %556 = vmatpush1.msra.mxu0 %v309
    %557 = vmatprep.subr.mxu0 %v314
    %558 = vmatpush1.msra.mxu0 %v313
    %559 = vmatprep.subr.mxu0 %v318
    %560 = vmatpush1.msra.mxu0 %v317
    %561 = vmatprep.subr.mxu0 %v322
    %562 = vmatpush1.msra.mxu0 %v321
    %563 = vmatprep.subr.mxu0 %v326
    %564 = vmatpush1.msra.mxu0 %v325
    %565 = vmatprep.subr.mxu0 %v330
    %566 = vmatpush1.msra.mxu0 %v329
    %567 = vmatprep.subr.mxu0 %v334
    %568 = vmatpush1.msra.mxu0 %v333
    %569 = vmatprep.subr.mxu0 %v338
    %570 = vmatpush1.msra.mxu0 %v337
    %571 = vmatprep.subr.mxu0 %v342
    %572 = vmatpush1.msra.mxu0 %v341
    %573 = vmatprep.subr.mxu0 %v346
    %574 = vmatpush1.msra.mxu0 %v345
    %575 = vmatprep.subr.mxu0 %v350
    %576 = vmatpush1.msra.mxu0 %v349
    %577 = vmatprep.subr.mxu0 %v354
    %578 = vmatpush1.msra.mxu0 %v353
    %579 = vmatprep.subr.mxu0 %v358
    %580 = vmatpush1.msra.mxu0 %v357
    %581 = vmatprep.subr.mxu0 %v362
    %582 = vmatpush1.msra.mxu0 %v361
    %583 = vmatprep.subr.mxu0 %v366
    %584 = vmatpush1.msra.mxu0 %v365
    %585 = vmatprep.subr.mxu0 %v370
    %586 = vmatpush1.msra.mxu0 %v369
    %587 = vmatprep.mubr.f32.mxu0 %v242
    %588 = vmatmul.mubr.f32.gmra.mrb[0].mxu0 %v241
    %v589 = vpop.f32.mrb[0].mxu0
    %v590 = vadd.f32 %v506, %v589
    %v591 = vpop.f32.mrb[0].mxu0
    %v592 = vadd.f32 %v510, %v591
    %593 = vdwg.mxu0
    %594 = vmatprep.subr.mxu0 %v374
    %595 = vmatpush1.msra.mxu0 %v373
    %596 = vmatprep.subr.mxu0 %v378
    %597 = vmatpush1.msra.mxu0 %v377
    %598 = vmatprep.subr.mxu0 %v382
    %599 = vmatpush1.msra.mxu0 %v381
    %600 = vmatprep.subr.mxu0 %v386
    %601 = vmatpush1.msra.mxu0 %v385
    %602 = vmatprep.subr.mxu0 %v390
    %603 = vmatpush1.msra.mxu0 %v389
    %604 = vmatprep.subr.mxu0 %v394
    %605 = vmatpush1.msra.mxu0 %v393
    %606 = vmatprep.subr.mxu0 %v398
    %607 = vmatpush1.msra.mxu0 %v397
    %608 = vmatprep.subr.mxu0 %v402
    %609 = vmatpush1.msra.mxu0 %v401
    %610 = vmatprep.subr.mxu0 %v406
    %611 = vmatpush1.msra.mxu0 %v405
    %612 = vmatprep.subr.mxu0 %v410
    %613 = vmatpush1.msra.mxu0 %v409
    %614 = vmatprep.subr.mxu0 %v414
    %615 = vmatpush1.msra.mxu0 %v413
    %616 = vmatprep.subr.mxu0 %v418
    %617 = vmatpush1.msra.mxu0 %v417
    %618 = vmatprep.subr.mxu0 %v422
    %619 = vmatpush1.msra.mxu0 %v421
    %620 = vmatprep.subr.mxu0 %v426
    %621 = vmatpush1.msra.mxu0 %v425
    %622 = vmatprep.subr.mxu0 %v430
    %623 = vmatpush1.msra.mxu0 %v429
    %624 = vmatprep.subr.mxu0 %v434
    %625 = vmatpush1.msra.mxu0 %v433
    %626 = vmatprep.subr.mxu0 %v438
    %627 = vmatpush1.msra.mxu0 %v437
    %628 = vmatprep.subr.mxu0 %v442
    %629 = vmatpush1.msra.mxu0 %v441
    %630 = vmatprep.subr.mxu0 %v446
    %631 = vmatpush1.msra.mxu0 %v445
    %632 = vmatprep.subr.mxu0 %v450
    %633 = vmatpush1.msra.mxu0 %v449
    %634 = vmatprep.subr.mxu0 %v454
    %635 = vmatpush1.msra.mxu0 %v453
    %636 = vmatprep.subr.mxu0 %v458
    %637 = vmatpush1.msra.mxu0 %v457
    %638 = vmatprep.subr.mxu0 %v462
    %639 = vmatpush1.msra.mxu0 %v461
    %640 = vmatprep.subr.mxu0 %v466
    %641 = vmatpush1.msra.mxu0 %v465
    %642 = vmatprep.subr.mxu0 %v470
    %643 = vmatpush1.msra.mxu0 %v469
    %644 = vmatprep.subr.mxu0 %v474
    %645 = vmatpush1.msra.mxu0 %v473
    %646 = vmatprep.subr.mxu0 %v478
    %647 = vmatpush1.msra.mxu0 %v477
    %648 = vmatprep.subr.mxu0 %v482
    %649 = vmatpush1.msra.mxu0 %v481
    %650 = vmatprep.subr.mxu0 %v486
    %651 = vmatpush1.msra.mxu0 %v485
    %652 = vmatprep.subr.mxu0 %v490
    %653 = vmatpush1.msra.mxu0 %v489
    %654 = vmatprep.subr.mxu0 %v494
    %655 = vmatpush1.msra.mxu0 %v493
    %656 = vmatprep.subr.mxu0 %v498
    %657 = vmatpush1.msra.mxu0 %v497
    %658 = vmatprep.mubr.f32.mxu0 %v244
    %659 = vmatmul.mubr.f32.gmra.mrb[0].mxu0 %v243
    %v660 = vpop.f32.mrb[0].mxu0
    %v661 = vadd.f32 %v590, %v660
    %v662 = vpop.f32.mrb[0].mxu0
    %v663 = vadd.f32 %v592, %v662
    %664 = vdwg.mxu0
    %665 = vmatprep.subr.mxu0 %v248
    %666 = vmatpush1.msra.mxu0 %v247
    %667 = vmatprep.subr.mxu0 %v252
    %668 = vmatpush1.msra.mxu0 %v251
    %669 = vmatprep.subr.mxu0 %v256
    %670 = vmatpush1.msra.mxu0 %v255
    %671 = vmatprep.subr.mxu0 %v260
    %672 = vmatpush1.msra.mxu0 %v259
    %673 = vmatprep.subr.mxu0 %v264
    %674 = vmatpush1.msra.mxu0 %v263
    %675 = vmatprep.subr.mxu0 %v268
    %676 = vmatpush1.msra.mxu0 %v267
    %677 = vmatprep.subr.mxu0 %v272
    %678 = vmatpush1.msra.mxu0 %v271
    %679 = vmatprep.subr.mxu0 %v276
    %680 = vmatpush1.msra.mxu0 %v275
    %681 = vmatprep.subr.mxu0 %v280
    %682 = vmatpush1.msra.mxu0 %v279
    %683 = vmatprep.subr.mxu0 %v284
    %684 = vmatpush1.msra.mxu0 %v283
    %685 = vmatprep.subr.mxu0 %v288
    %686 = vmatpush1.msra.mxu0 %v287
    %687 = vmatprep.subr.mxu0 %v292
    %688 = vmatpush1.msra.mxu0 %v291
    %689 = vmatprep.subr.mxu0 %v296
    %690 = vmatpush1.msra.mxu0 %v295
    %691 = vmatprep.subr.mxu0 %v300
    %692 = vmatpush1.msra.mxu0 %v299
    %693 = vmatprep.subr.mxu0 %v304
    %694 = vmatpush1.msra.mxu0 %v303
    %695 = vmatprep.subr.mxu0 %v308
    %696 = vmatpush1.msra.mxu0 %v307
    %697 = vmatprep.subr.mxu0 %v312
    %698 = vmatpush1.msra.mxu0 %v311
    %699 = vmatprep.subr.mxu0 %v316
    %700 = vmatpush1.msra.mxu0 %v315
    %701 = vmatprep.subr.mxu0 %v320
    %702 = vmatpush1.msra.mxu0 %v319
    %703 = vmatprep.subr.mxu0 %v324
    %704 = vmatpush1.msra.mxu0 %v323
    %705 = vmatprep.subr.mxu0 %v328
    %706 = vmatpush1.msra.mxu0 %v327
    %707 = vmatprep.subr.mxu0 %v332
    %708 = vmatpush1.msra.mxu0 %v331
    %709 = vmatprep.subr.mxu0 %v336
    %710 = vmatpush1.msra.mxu0 %v335
    %711 = vmatprep.subr.mxu0 %v340
    %712 = vmatpush1.msra.mxu0 %v339
    %713 = vmatprep.subr.mxu0 %v344
    %714 = vmatpush1.msra.mxu0 %v343
    %715 = vmatprep.subr.mxu0 %v348
    %716 = vmatpush1.msra.mxu0 %v347
    %717 = vmatprep.subr.mxu0 %v352
    %718 = vmatpush1.msra.mxu0 %v351
    %719 = vmatprep.subr.mxu0 %v356
    %720 = vmatpush1.msra.mxu0 %v355
    %721 = vmatprep.subr.mxu0 %v360
    %722 = vmatpush1.msra.mxu0 %v359
    %723 = vmatprep.subr.mxu0 %v364
    %724 = vmatpush1.msra.mxu0 %v363
    %725 = vmatprep.subr.mxu0 %v368
    %726 = vmatpush1.msra.mxu0 %v367
    %727 = vmatprep.subr.mxu0 %v372
    %728 = vmatpush1.msra.mxu0 %v371
    %729 = vmatprep.mubr.f32.mxu0 %v242
    %730 = vmatmul.mubr.f32.gmra.mrb[0].mxu0 %v241
    %v731 = vpop.f32.mrb[0].mxu0
    %v732 = vadd.f32 %v514, %v731
    %v733 = vpop.f32.mrb[0].mxu0
    %v734 = vadd.f32 %v518, %v733
    %735 = vdwg.mxu0
    %736 = vmatprep.subr.mxu0 %v376
    %737 = vmatpush1.msra.mxu0 %v375
    %738 = vmatprep.subr.mxu0 %v380
    %739 = vmatpush1.msra.mxu0 %v379
    %740 = vmatprep.subr.mxu0 %v384
    %741 = vmatpush1.msra.mxu0 %v383
    %742 = vmatprep.subr.mxu0 %v388
    %743 = vmatpush1.msra.mxu0 %v387
    %744 = vmatprep.subr.mxu0 %v392
    %745 = vmatpush1.msra.mxu0 %v391
    %746 = vmatprep.subr.mxu0 %v396
    %747 = vmatpush1.msra.mxu0 %v395
    %748 = vmatprep.subr.mxu0 %v400
    %749 = vmatpush1.msra.mxu0 %v399
    %750 = vmatprep.subr.mxu0 %v404
    %751 = vmatpush1.msra.mxu0 %v403
    %752 = vmatprep.subr.mxu0 %v408
    %753 = vmatpush1.msra.mxu0 %v407
    %754 = vmatprep.subr.mxu0 %v412
    %755 = vmatpush1.msra.mxu0 %v411
    %756 = vmatprep.subr.mxu0 %v416
    %757 = vmatpush1.msra.mxu0 %v415
    %758 = vmatprep.subr.mxu0 %v420
    %759 = vmatpush1.msra.mxu0 %v419
    %760 = vmatprep.subr.mxu0 %v424
    %761 = vmatpush1.msra.mxu0 %v423
    %762 = vmatprep.subr.mxu0 %v428
    %763 = vmatpush1.msra.mxu0 %v427
    %764 = vmatprep.subr.mxu0 %v432
    %765 = vmatpush1.msra.mxu0 %v431
    %766 = vmatprep.subr.mxu0 %v436
    %767 = vmatpush1.msra.mxu0 %v435
    %768 = vmatprep.subr.mxu0 %v440
    %769 = vmatpush1.msra.mxu0 %v439
    %770 = vmatprep.subr.mxu0 %v444
    %771 = vmatpush1.msra.mxu0 %v443
    %772 = vmatprep.subr.mxu0 %v448
    %773 = vmatpush1.msra.mxu0 %v447
    %774 = vmatprep.subr.mxu0 %v452
    %775 = vmatpush1.msra.mxu0 %v451
    %776 = vmatprep.subr.mxu0 %v456
    %777 = vmatpush1.msra.mxu0 %v455
    %778 = vmatprep.subr.mxu0 %v460
    %779 = vmatpush1.msra.mxu0 %v459
    %780 = vmatprep.subr.mxu0 %v464
    %781 = vmatpush1.msra.mxu0 %v463
    %782 = vmatprep.subr.mxu0 %v468
    %783 = vmatpush1.msra.mxu0 %v467
    %784 = vmatprep.subr.mxu0 %v472
    %785 = vmatpush1.msra.mxu0 %v471
    %786 = vmatprep.subr.mxu0 %v476
    %787 = vmatpush1.msra.mxu0 %v475
    %788 = vmatprep.subr.mxu0 %v480
    %789 = vmatpush1.msra.mxu0 %v479
    %790 = vmatprep.subr.mxu0 %v484
    %791 = vmatpush1.msra.mxu0 %v483
    %792 = vmatprep.subr.mxu0 %v488
    %793 = vmatpush1.msra.mxu0 %v487
    %794 = vmatprep.subr.mxu0 %v492
    %795 = vmatpush1.msra.mxu0 %v491
    %796 = vmatprep.subr.mxu0 %v496
    %797 = vmatpush1.msra.mxu0 %v495
    %798 = vmatprep.subr.mxu0 %v500
    %799 = vmatpush1.msra.mxu0 %v499
    %800 = vmatprep.mubr.f32.mxu0 %v244
    %801 = vmatmul.mubr.f32.gmra.mrb[0].mxu0 %v243
    %v802 = vpop.f32.mrb[0].mxu0
    %v803 = vadd.f32 %v732, %v802
    %v804 = vpop.f32.mrb[0].mxu0
    %v805 = vadd.f32 %v734, %v804
    %806 = vdwg.mxu0
    %v807 = vtanh.pop %v661
    %v808 = vtanh.pop %v663
    %v809 = vtanh.pop %v803
    %v810 = vtanh.pop %v805
    %v811 = vpack.c.bf16 %v807, %v807
    %v812 = vpack.c.bf16 %v808, %v808
    %v813 = vpack.c.bf16 %v809, %v809
    %v814 = vpack.c.bf16 %v810, %v810
    %v819 = vunpack.c.l.b16 %v811
    %v820 = vunpack.c.l.b16 %v812
    %v821 = vunpack.c.l.b16 %v813
    %v822 = vunpack.c.l.b16 %v814
    %v823 = vpack.c.b16 %v820, %v819
    %v824 = vpack.c.b16 %v822, %v821
    %827 = vst [vmem:[#allocation8] sm:$0xff] %v823
    %828 = vst [vmem:[#allocation8 + $0x8] sm:$0xff] %v824
    // Predicated region
    $region34: #{tpu_custom_call.1} parent=1 // pred_check
      _
    $region35: #{tpu_custom_call.1} parent=1 // pred_check_branch
      %830 = sbr.rel (0) target = $region37
    $region36: #{tpu_custom_call.1} parent=1 // pred_region
      %s832 = ssub.s32 256, 256
      %833 = vsyncadd [#allocation4], %s832
      %s835 = sshll.u32 [#allocation8], 4
      %s836 = int_to_ptr.vmem [resolvable:$true] %s835
      %838 = dma.vmem_to_hbm [thread:$0]  %s836, 256, %s5, [#allocation4]
    $region37: #{tpu_custom_call.1} parent=1 // pred_fallthru
      _
    // Predicated region
    $region38: #{tpu_custom_call.1} parent=1 // pred_check
      _
    $region39: #{tpu_custom_call.1} parent=1 // pred_check_branch
      %840 = sbr.rel (0) target = $region41
    $region40: #{tpu_custom_call.1} parent=1 // pred_region
      %841 = dma.done [#allocation4], 256
    $region41: #{tpu_custom_call.1} parent=1 // pred_fallthru
      _
    %842 = vsyncpa [#allocation3], 1
    %843 = vsyncpa [#allocation6], 1
    %844 = vsyncpa [#allocation4], 1

</llo_original>
